<compile_context>
chip_gen: v7x
topology: tpu7x:2x2x1
jax: 0.10.0
libtpu: 0.0.40
codegen_flags: <defaults>
</compile_context>

<pallas_src>
import functools

import jax
import jax.numpy as jnp
from jax.experimental import pallas as pl
from jax.experimental.pallas import tpu as pltpu

LN_EPS = 1e-5
BN_EPS = 1e-5


def _round_up(n, m):
    return (n + m - 1) // m * m


def conformer_conv_kernel(
    x_ref,       # (rows, Dp) f32, rows = batch_tile * t_pad
    ln_g_ref,    # (1, Dp)  f32
    ln_b_ref,    # (1, Dp)  f32
    w1o_ref,     # (Dp, Dp) bf16  pointwise conv #1, "output" half
    b1o_ref,     # (1, Dp)  f32
    w1g_ref,     # (Dp, Dp) bf16  pointwise conv #1, "gate" half
    b1g_ref,     # (1, Dp)  f32
    dw_ref,      # (K, Dp)  f32   depthwise taps (per channel)
    bn_g_ref,    # (1, Dp)  f32
    bn_b_ref,    # (1, Dp)  f32
    bn_m_ref,    # (1, Dp)  f32   running mean
    bn_v_ref,    # (1, Dp)  f32   running var
    w2_ref,      # (Dp, Dp) bf16  pointwise conv #2
    b2_ref,      # (1, Dp)  f32
    o_ref,       # (rows, Dp) f32
    *, batch_tile, t_pad, t_true, d_true,
):
    rows, Dp = x_ref.shape
    K = dw_ref.shape[0]
    P = (K - 1) // 2

    x = x_ref[...]  # (rows, Dp) f32, padded lanes (d >= d_true) are zero

    # Lane mask (real channels) and per-row time index within each batch slab.
    lane = jax.lax.broadcasted_iota(jnp.int32, (rows, Dp), 1)
    dmask = lane < d_true
    if batch_tile == 1:
        t_idx = jax.lax.broadcasted_iota(jnp.int32, (rows, Dp), 0)
    else:
        t_idx = jax.lax.broadcasted_iota(
            jnp.int32, (batch_tile, t_pad, Dp), 1
        ).reshape(rows, Dp)

    # ---- LayerNorm over the true channel dim ----
    inv_d = 1.0 / d_true
    mean = jnp.sum(x, axis=-1, keepdims=True) * inv_d      # padded lanes are 0
    cent = jnp.where(dmask, x - mean, 0.0)
    var = jnp.sum(cent * cent, axis=-1, keepdims=True) * inv_d
    xn = cent * jax.lax.rsqrt(var + LN_EPS) * ln_g_ref[...] + ln_b_ref[...]

    # ---- Pointwise conv #1 (two DxD bf16 matmuls, f32 accumulate) + GLU ----
    xn_bf = xn.astype(jnp.bfloat16)
    out = jnp.dot(xn_bf, w1o_ref[...],
                  preferred_element_type=jnp.float32) + b1o_ref[...]
    gate = jnp.dot(xn_bf, w1g_ref[...],
                   preferred_element_type=jnp.float32) + b1g_ref[...]
    g = out * jax.nn.sigmoid(gate)                          # (rows, Dp)

    # ---- Depthwise conv along time ('same' zero padding), BN scale folded ----
    bn_scale = bn_g_ref[...] * jax.lax.rsqrt(bn_v_ref[...] + BN_EPS)
    bn_shift = bn_b_ref[...] - bn_m_ref[...] * bn_scale
    dw = dw_ref[...] * bn_scale                             # (K, Dp)

    y = jnp.zeros((rows, Dp), jnp.float32)
    for k in range(K):              # static unroll over taps
        s = P - k                   # y[t] += g[t - s] * w[k]
        if s >= t_true or s <= -t_true:
            continue                # tap never touches a real output row
        shift = s % rows
        rolled = pltpu.roll(g, shift=shift, axis=0) if shift else g
        # valid iff 0 <= t - s < t_true (handles both the conv zero padding
        # and the time/batch padding rows; wrapped rows fall outside the mask)
        mask = (t_idx >= s) & (t_idx < t_true + s)
        y = y + jnp.where(mask, rolled, 0.0) * dw[k:k + 1, :]

    # ---- BatchNorm shift (scale already folded into taps) + Swish ----
    y = y + bn_shift
    y = y * jax.nn.sigmoid(y)

    # ---- Pointwise conv #2 (bf16 matmul, f32 accumulate) ----
    o = jnp.dot(y.astype(jnp.bfloat16), w2_ref[...],
                preferred_element_type=jnp.float32) + b2_ref[...]

    # Dropout: identity at inference.
    o_ref[...] = o


def _choose_batch_tile(B, Tp, Dp):
    """Pack batch rows per grid step: bigger MXU M-tile, modest VMEM."""
    bytes_per_row = Dp * 4
    vmem_budget = 24 << 20                       # per-step working set budget
    max_by_vmem = max(1, vmem_budget // (6 * Tp * bytes_per_row))
    max_by_rows = max(1, 512 // Tp)              # target M tile up to ~512 rows
    bb = max(1, min(B, max_by_rows, max_by_vmem))
    if B >= 2:                                   # keep >=2 grid steps (v7x: 2 TCs)
        bb = min(bb, (B + 1) // 2)
    return bb


def conformer_conv_module(x, params):
    """x: (B, T, D) float32 -> (B, T, D) float32."""
    B, T, D = x.shape
    K = params["dw_w"].shape[0]
    assert K % 2 == 1, "depthwise kernel_size must be odd for 'same' padding"

    Dp = _round_up(D, 128)      # lane-dense channels
    Tp = _round_up(T, 8)        # sublane-aligned time
    Bb = _choose_batch_tile(B, Tp, Dp)
    Bp = _round_up(B, Bb)
    rows_per_step = Bb * Tp
    n_steps = Bp // Bb

    f32, bf16 = jnp.float32, jnp.bfloat16

    def pad_lane(a):            # (1, d)-like -> (1, Dp), zero padded
        return jnp.pad(a.astype(f32), ((0, 0), (0, Dp - a.shape[1])))

    def pad_mat(a):             # (D, D) -> (Dp, Dp) bf16, zero padded
        return jnp.pad(a.astype(f32),
                       ((0, Dp - a.shape[0]), (0, Dp - a.shape[1]))).astype(bf16)

    # Input: zero-pad to (Bp, Tp, Dp) and flatten time into a lane-dense slab.
    xp = jnp.pad(x.astype(f32), ((0, Bp - B), (0, Tp - T), (0, Dp - D)))
    xp = xp.reshape(Bp * Tp, Dp)

    w1 = params["w1"].astype(f32)
    b1 = params["b1"].astype(f32)
    w1o, w1g = pad_mat(w1[:, :D]), pad_mat(w1[:, D:])
    b1o, b1g = pad_lane(b1[:, :D]), pad_lane(b1[:, D:])
    w2 = pad_mat(params["w2"])
    b2 = pad_lane(params["b2"])
    dw = jnp.pad(params["dw_w"].astype(f32), ((0, 0), (0, Dp - D)))

    ln_g, ln_b = pad_lane(params["ln_g"]), pad_lane(params["ln_b"])
    bn_g, bn_b = pad_lane(params["bn_g"]), pad_lane(params["bn_b"])
    bn_m, bn_v = pad_lane(params["bn_m"]), pad_lane(params["bn_v"])

    def full(shape):
        return pl.BlockSpec(shape, lambda i: (0,) * len(shape))

    row_spec = pl.BlockSpec((rows_per_step, Dp), lambda i: (i, 0))

    in_specs = [
        row_spec,                          # x
        full((1, Dp)), full((1, Dp)),      # layernorm gamma, beta
        full((Dp, Dp)), full((1, Dp)),     # pw conv1 "out" half W, b
        full((Dp, Dp)), full((1, Dp)),     # pw conv1 "gate" half W, b
        full((K, Dp)),                     # depthwise taps
        full((1, Dp)), full((1, Dp)), full((1, Dp)), full((1, Dp)),  # bn
        full((Dp, Dp)), full((1, Dp)),     # pw conv2 W, b
    ]

    m_total = Bp * Tp
    cost = pl.CostEstimate(
        flops=2 * m_total * Dp * Dp * 3 + 2 * m_total * Dp * K,
        transcendentals=3 * m_total * Dp,               # 2 sigmoids + rsqrt-ish
        bytes_accessed=2 * m_total * Dp * 4 + 3 * Dp * Dp * 2
        + (K + 10) * Dp * 4,
    )

    kernel = functools.partial(
        conformer_conv_kernel,
        batch_tile=Bb, t_pad=Tp, t_true=T, d_true=D,
    )

    out = pl.pallas_call(
        kernel,
        out_shape=jax.ShapeDtypeStruct((Bp * Tp, Dp), f32),
        grid=(n_steps,),
        in_specs=in_specs,
        out_specs=row_spec,
        compiler_params=pltpu.CompilerParams(
            dimension_semantics=("parallel",),
            vmem_limit_bytes=48 * 1024 * 1024,
        ),
        cost_estimate=cost,
    )(
        xp,
        ln_g, ln_b,
        w1o, b1o, w1g, b1g,
        dw,
        bn_g, bn_b, bn_m, bn_v,
        w2, b2,
    )

    return out.reshape(Bp, Tp, Dp)[:B, :T, :D]


def reference(x, p):
    """Pure-JAX f32 reference of the same forward (for sanity checking)."""
    B, T, D = x.shape
    mean = x.mean(-1, keepdims=True)
    var = ((x - mean) ** 2).mean(-1, keepdims=True)
    xn = (x - mean) / jnp.sqrt(var + LN_EPS) * p["ln_g"][0] + p["ln_b"][0]
    h = xn @ p["w1"] + p["b1"][0]
    g = h[..., :D] * jax.nn.sigmoid(h[..., D:])
    K = p["dw_w"].shape[0]
    P = (K - 1) // 2
    gp = jnp.pad(g, ((0, 0), (P, P), (0, 0)))
    y = sum(gp[:, k:k + T, :] * p["dw_w"][k] for k in range(K))
    scale = p["bn_g"][0] / jnp.sqrt(p["bn_v"][0] + BN_EPS)
    shift = p["bn_b"][0] - p["bn_m"][0] * scale
    y = y * scale + shift
    y = y * jax.nn.sigmoid(y)
    return y @ p["w2"] + p["b2"][0]


def make_params(key, D, K):
    ks = jax.random.split(key, 12)
    return {
        "ln_g": 1.0 + 0.1 * jax.random.normal(ks[0], (1, D), jnp.float32),
        "ln_b": 0.1 * jax.random.normal(ks[1], (1, D), jnp.float32),
        "w1":   0.2 * jax.random.normal(ks[2], (D, 2 * D), jnp.float32),
        "b1":   0.1 * jax.random.normal(ks[3], (1, 2 * D), jnp.float32),
        "dw_w": 0.2 * jax.random.normal(ks[4], (K, D), jnp.float32),
        "bn_g": 1.0 + 0.1 * jax.random.normal(ks[5], (1, D), jnp.float32),
        "bn_b": 0.1 * jax.random.normal(ks[6], (1, D), jnp.float32),
        "bn_m": 0.05 * jax.random.normal(ks[7], (1, D), jnp.float32),
        "bn_v": jax.random.uniform(ks[8], (1, D), jnp.float32, 0.5, 1.5),
        "w2":   0.2 * jax.random.normal(ks[9], (D, D), jnp.float32),
        "b2":   0.1 * jax.random.normal(ks[10], (1, D), jnp.float32),
    }


if __name__ == "__main__":
    B, T, D, K = 2, 16, 32, 7  # kernel_size=7 (odd), stride_size=1
    key = jax.random.PRNGKey(0)
    kx, kp = jax.random.split(key)
    x = jax.random.normal(kx, (B, T, D), jnp.float32)
    params = make_params(kp, D, K)

    out = jax.jit(conformer_conv_module)(x, params)
    out = jax.block_until_ready(out)

    ref = reference(x, params)
    assert out.shape == (B, T, D)
    max_err = float(jnp.max(jnp.abs(out - ref)))
    # bf16 matmuls (f32 accumulation) vs. f32 reference -> looser tolerance.
    assert jnp.allclose(out, ref, atol=5e-2, rtol=5e-2), max_err
    print("KERNEL_OK")
</pallas_src>

<mosaic_0001>
module attributes {stable_mosaic.version = 11 : i64} {
  func.func @conformer_conv_kernel(%arg0: i32, %arg1: memref<16x128xf32, #tpu.memory_space<vmem>>, %arg2: memref<1x128xf32, #tpu.memory_space<vmem>>, %arg3: memref<1x128xf32, #tpu.memory_space<vmem>>, %arg4: memref<128x128xbf16, #tpu.memory_space<vmem>>, %arg5: memref<1x128xf32, #tpu.memory_space<vmem>>, %arg6: memref<128x128xbf16, #tpu.memory_space<vmem>>, %arg7: memref<1x128xf32, #tpu.memory_space<vmem>>, %arg8: memref<7x128xf32, #tpu.memory_space<vmem>>, %arg9: memref<1x128xf32, #tpu.memory_space<vmem>>, %arg10: memref<1x128xf32, #tpu.memory_space<vmem>>, %arg11: memref<1x128xf32, #tpu.memory_space<vmem>>, %arg12: memref<1x128xf32, #tpu.memory_space<vmem>>, %arg13: memref<128x128xbf16, #tpu.memory_space<vmem>>, %arg14: memref<1x128xf32, #tpu.memory_space<vmem>>, %arg15: memref<16x128xf32, #tpu.memory_space<vmem>>) attributes {dimension_semantics = [#tpu.dimension_semantics<parallel>], iteration_bounds = array<i64: 2>, scalar_prefetch = 0 : i64, scratch_operands = 0 : i64, tpu.core_type = #tpu.core_type<tc>, window_params = [{transform_indices = @transform_0, window_bounds = array<i64: 16, 128>}, {pipeline_mode = #tpu.pipeline_mode<synchronous>, transform_indices = @transform_1, window_bounds = array<i64: 1, 128>}, {pipeline_mode = #tpu.pipeline_mode<synchronous>, transform_indices = @transform_2, window_bounds = array<i64: 1, 128>}, {pipeline_mode = #tpu.pipeline_mode<synchronous>, transform_indices = @transform_3, window_bounds = array<i64: 128, 128>}, {pipeline_mode = #tpu.pipeline_mode<synchronous>, transform_indices = @transform_4, window_bounds = array<i64: 1, 128>}, {pipeline_mode = #tpu.pipeline_mode<synchronous>, transform_indices = @transform_5, window_bounds = array<i64: 128, 128>}, {pipeline_mode = #tpu.pipeline_mode<synchronous>, transform_indices = @transform_6, window_bounds = array<i64: 1, 128>}, {pipeline_mode = #tpu.pipeline_mode<synchronous>, transform_indices = @transform_7, window_bounds = array<i64: 7, 128>}, {pipeline_mode = #tpu.pipeline_mode<synchronous>, transform_indices = @transform_8, window_bounds = array<i64: 1, 128>}, {pipeline_mode = #tpu.pipeline_mode<synchronous>, transform_indices = @transform_9, window_bounds = array<i64: 1, 128>}, {pipeline_mode = #tpu.pipeline_mode<synchronous>, transform_indices = @transform_10, window_bounds = array<i64: 1, 128>}, {pipeline_mode = #tpu.pipeline_mode<synchronous>, transform_indices = @transform_11, window_bounds = array<i64: 1, 128>}, {pipeline_mode = #tpu.pipeline_mode<synchronous>, transform_indices = @transform_12, window_bounds = array<i64: 128, 128>}, {pipeline_mode = #tpu.pipeline_mode<synchronous>, transform_indices = @transform_13, window_bounds = array<i64: 1, 128>}, {transform_indices = @transform_14, window_bounds = array<i64: 16, 128>}]} {
    %c0 = arith.constant 0 : index
    %c0_0 = arith.constant 0 : index
    %0 = vector.load %arg1[%c0, %c0_0] : memref<16x128xf32, #tpu.memory_space<vmem>>, vector<16x128xf32>
    %1 = tpu.iota {dimensions = array<i32: 1>} : vector<16x128xi32>
    %c32_i32 = arith.constant 32 : i32
    %2 = vector.broadcast %c32_i32 : i32 to vector<16x128xi32>
    %3 = arith.cmpi slt, %1, %2 : vector<16x128xi32>
    %4 = tpu.iota {dimensions = array<i32: 0>} : vector<16x128xi32>
    %cst = arith.constant dense<0.000000e+00> : vector<16xf32>
    %5 = vector.multi_reduction <add>, %0, %cst [1] : vector<16x128xf32> to vector<16xf32>
    %6 = vector.shape_cast %5 : vector<16xf32> to vector<16x1xf32>
    %cst_1 = arith.constant 3.125000e-02 : f32
    %7 = vector.broadcast %cst_1 : f32 to vector<16x1xf32>
    %8 = arith.mulf %6, %7 : vector<16x1xf32>
    %9 = vector.broadcast %8 : vector<16x1xf32> to vector<16x128xf32>
    %10 = arith.subf %0, %9 : vector<16x128xf32>
    %cst_2 = arith.constant 0.000000e+00 : f32
    %11 = vector.broadcast %cst_2 : f32 to vector<16x128xf32>
    %12 = arith.select %3, %10, %11 : vector<16x128xi1>, vector<16x128xf32>
    %13 = arith.mulf %12, %12 : vector<16x128xf32>
    %cst_3 = arith.constant dense<0.000000e+00> : vector<16xf32>
    %14 = vector.multi_reduction <add>, %13, %cst_3 [1] : vector<16x128xf32> to vector<16xf32>
    %15 = vector.shape_cast %14 : vector<16xf32> to vector<16x1xf32>
    %cst_4 = arith.constant 3.125000e-02 : f32
    %16 = vector.broadcast %cst_4 : f32 to vector<16x1xf32>
    %17 = arith.mulf %15, %16 : vector<16x1xf32>
    %cst_5 = arith.constant 9.99999974E-6 : f32
    %18 = vector.broadcast %cst_5 : f32 to vector<16x1xf32>
    %19 = arith.addf %17, %18 : vector<16x1xf32>
    %20 = math.rsqrt %19 : vector<16x1xf32>
    %21 = vector.broadcast %20 : vector<16x1xf32> to vector<16x128xf32>
    %22 = arith.mulf %12, %21 : vector<16x128xf32>
    %c0_6 = arith.constant 0 : index
    %c0_7 = arith.constant 0 : index
    %23 = vector.load %arg2[%c0_6, %c0_7] : memref<1x128xf32, #tpu.memory_space<vmem>>, vector<1x128xf32>
    %24 = vector.broadcast %23 : vector<1x128xf32> to vector<16x128xf32>
    %25 = arith.mulf %22, %24 : vector<16x128xf32>
    %c0_8 = arith.constant 0 : index
    %c0_9 = arith.constant 0 : index
    %26 = vector.load %arg3[%c0_8, %c0_9] : memref<1x128xf32, #tpu.memory_space<vmem>>, vector<1x128xf32>
    %27 = vector.broadcast %26 : vector<1x128xf32> to vector<16x128xf32>
    %28 = arith.addf %25, %27 : vector<16x128xf32>
    %29 = arith.truncf %28 : vector<16x128xf32> to vector<16x128xbf16>
    %c0_10 = arith.constant 0 : index
    %c0_11 = arith.constant 0 : index
    %30 = vector.load %arg4[%c0_10, %c0_11] : memref<128x128xbf16, #tpu.memory_space<vmem>>, vector<128x128xbf16>
    %cst_12 = arith.constant dense<0.000000e+00> : vector<16x128xf32>
    %31 = tpu.matmul %29, %30, %cst_12 {dimension_numbers = #tpu.dot_dimension_numbers<[1], [0], [0], [1], [0, 0, 1, 1], [], []>} : vector<16x128xbf16>, vector<128x128xbf16>, vector<16x128xf32> -> vector<16x128xf32>
    %c0_13 = arith.constant 0 : index
    %c0_14 = arith.constant 0 : index
    %32 = vector.load %arg5[%c0_13, %c0_14] : memref<1x128xf32, #tpu.memory_space<vmem>>, vector<1x128xf32>
    %33 = vector.broadcast %32 : vector<1x128xf32> to vector<16x128xf32>
    %34 = arith.addf %31, %33 : vector<16x128xf32>
    %c0_15 = arith.constant 0 : index
    %c0_16 = arith.constant 0 : index
    %35 = vector.load %arg6[%c0_15, %c0_16] : memref<128x128xbf16, #tpu.memory_space<vmem>>, vector<128x128xbf16>
    %cst_17 = arith.constant dense<0.000000e+00> : vector<16x128xf32>
    %36 = tpu.matmul %29, %35, %cst_17 {dimension_numbers = #tpu.dot_dimension_numbers<[1], [0], [0], [1], [0, 0, 1, 1], [], []>} : vector<16x128xbf16>, vector<128x128xbf16>, vector<16x128xf32> -> vector<16x128xf32>
    %c0_18 = arith.constant 0 : index
    %c0_19 = arith.constant 0 : index
    %37 = vector.load %arg7[%c0_18, %c0_19] : memref<1x128xf32, #tpu.memory_space<vmem>>, vector<1x128xf32>
    %38 = vector.broadcast %37 : vector<1x128xf32> to vector<16x128xf32>
    %39 = arith.addf %36, %38 : vector<16x128xf32>
    %40 = arith.negf %39 : vector<16x128xf32>
    %41 = math.exp %40 : vector<16x128xf32>
    %cst_20 = arith.constant 1.000000e+00 : f32
    %42 = vector.broadcast %cst_20 : f32 to vector<16x128xf32>
    %43 = arith.addf %42, %41 : vector<16x128xf32>
    %44 = arith.divf %42, %43 : vector<16x128xf32>
    %45 = arith.mulf %34, %44 : vector<16x128xf32>
    %c0_21 = arith.constant 0 : index
    %c0_22 = arith.constant 0 : index
    %46 = vector.load %arg9[%c0_21, %c0_22] : memref<1x128xf32, #tpu.memory_space<vmem>>, vector<1x128xf32>
    %c0_23 = arith.constant 0 : index
    %c0_24 = arith.constant 0 : index
    %47 = vector.load %arg12[%c0_23, %c0_24] : memref<1x128xf32, #tpu.memory_space<vmem>>, vector<1x128xf32>
    %cst_25 = arith.constant 9.99999974E-6 : f32
    %48 = vector.broadcast %cst_25 : f32 to vector<1x128xf32>
    %49 = arith.addf %47, %48 : vector<1x128xf32>
    %50 = math.rsqrt %49 : vector<1x128xf32>
    %51 = arith.mulf %46, %50 : vector<1x128xf32>
    %c0_26 = arith.constant 0 : index
    %c0_27 = arith.constant 0 : index
    %52 = vector.load %arg10[%c0_26, %c0_27] : memref<1x128xf32, #tpu.memory_space<vmem>>, vector<1x128xf32>
    %c0_28 = arith.constant 0 : index
    %c0_29 = arith.constant 0 : index
    %53 = vector.load %arg11[%c0_28, %c0_29] : memref<1x128xf32, #tpu.memory_space<vmem>>, vector<1x128xf32>
    %54 = arith.mulf %53, %51 : vector<1x128xf32>
    %55 = arith.subf %52, %54 : vector<1x128xf32>
    %c0_30 = arith.constant 0 : index
    %c0_31 = arith.constant 0 : index
    %56 = vector.load %arg8[%c0_30, %c0_31] : memref<7x128xf32, #tpu.memory_space<vmem>>, vector<7x128xf32>
    %57 = vector.broadcast %51 : vector<1x128xf32> to vector<7x128xf32>
    %58 = arith.mulf %56, %57 : vector<7x128xf32>
    %cst_32 = arith.constant 0.000000e+00 : f32
    %59 = vector.broadcast %cst_32 : f32 to vector<16x128xf32>
    %c3_i32 = arith.constant 3 : i32
    %60 = tpu.dynamic_rotate %45 by %c3_i32 dim 0 : vector<16x128xf32>, i32 -> vector<16x128xf32>
    %c3_i32_33 = arith.constant 3 : i32
    %61 = vector.broadcast %c3_i32_33 : i32 to vector<16x128xi32>
    %62 = arith.cmpi sge, %4, %61 : vector<16x128xi32>
    %c19_i32 = arith.constant 19 : i32
    %63 = vector.broadcast %c19_i32 : i32 to vector<16x128xi32>
    %64 = arith.cmpi slt, %4, %63 : vector<16x128xi32>
    %65 = arith.andi %62, %64 : vector<16x128xi1>
    %cst_34 = arith.constant 0.000000e+00 : f32
    %66 = vector.broadcast %cst_34 : f32 to vector<16x128xf32>
    %67 = arith.select %65, %60, %66 : vector<16x128xi1>, vector<16x128xf32>
    %68 = vector.extract_strided_slice %58 {offsets = [0, 0], sizes = [1, 128], strides = [1, 1]} : vector<7x128xf32> to vector<1x128xf32>
    %69 = vector.broadcast %68 : vector<1x128xf32> to vector<16x128xf32>
    %70 = arith.mulf %67, %69 : vector<16x128xf32>
    %71 = arith.addf %59, %70 : vector<16x128xf32>
    %c2_i32 = arith.constant 2 : i32
    %72 = tpu.dynamic_rotate %45 by %c2_i32 dim 0 : vector<16x128xf32>, i32 -> vector<16x128xf32>
    %c2_i32_35 = arith.constant 2 : i32
    %73 = vector.broadcast %c2_i32_35 : i32 to vector<16x128xi32>
    %74 = arith.cmpi sge, %4, %73 : vector<16x128xi32>
    %c18_i32 = arith.constant 18 : i32
    %75 = vector.broadcast %c18_i32 : i32 to vector<16x128xi32>
    %76 = arith.cmpi slt, %4, %75 : vector<16x128xi32>
    %77 = arith.andi %74, %76 : vector<16x128xi1>
    %cst_36 = arith.constant 0.000000e+00 : f32
    %78 = vector.broadcast %cst_36 : f32 to vector<16x128xf32>
    %79 = arith.select %77, %72, %78 : vector<16x128xi1>, vector<16x128xf32>
    %80 = vector.extract_strided_slice %58 {offsets = [1, 0], sizes = [1, 128], strides = [1, 1]} : vector<7x128xf32> to vector<1x128xf32>
    %81 = vector.broadcast %80 : vector<1x128xf32> to vector<16x128xf32>
    %82 = arith.mulf %79, %81 : vector<16x128xf32>
    %83 = arith.addf %71, %82 : vector<16x128xf32>
    %c1_i32 = arith.constant 1 : i32
    %84 = tpu.dynamic_rotate %45 by %c1_i32 dim 0 : vector<16x128xf32>, i32 -> vector<16x128xf32>
    %c1_i32_37 = arith.constant 1 : i32
    %85 = vector.broadcast %c1_i32_37 : i32 to vector<16x128xi32>
    %86 = arith.cmpi sge, %4, %85 : vector<16x128xi32>
    %c17_i32 = arith.constant 17 : i32
    %87 = vector.broadcast %c17_i32 : i32 to vector<16x128xi32>
    %88 = arith.cmpi slt, %4, %87 : vector<16x128xi32>
    %89 = arith.andi %86, %88 : vector<16x128xi1>
    %cst_38 = arith.constant 0.000000e+00 : f32
    %90 = vector.broadcast %cst_38 : f32 to vector<16x128xf32>
    %91 = arith.select %89, %84, %90 : vector<16x128xi1>, vector<16x128xf32>
    %92 = vector.extract_strided_slice %58 {offsets = [2, 0], sizes = [1, 128], strides = [1, 1]} : vector<7x128xf32> to vector<1x128xf32>
    %93 = vector.broadcast %92 : vector<1x128xf32> to vector<16x128xf32>
    %94 = arith.mulf %91, %93 : vector<16x128xf32>
    %95 = arith.addf %83, %94 : vector<16x128xf32>
    %c0_i32 = arith.constant 0 : i32
    %96 = vector.broadcast %c0_i32 : i32 to vector<16x128xi32>
    %97 = arith.cmpi sge, %4, %96 : vector<16x128xi32>
    %c16_i32 = arith.constant 16 : i32
    %98 = vector.broadcast %c16_i32 : i32 to vector<16x128xi32>
    %99 = arith.cmpi slt, %4, %98 : vector<16x128xi32>
    %100 = arith.andi %97, %99 : vector<16x128xi1>
    %cst_39 = arith.constant 0.000000e+00 : f32
    %101 = vector.broadcast %cst_39 : f32 to vector<16x128xf32>
    %102 = arith.select %100, %45, %101 : vector<16x128xi1>, vector<16x128xf32>
    %103 = vector.extract_strided_slice %58 {offsets = [3, 0], sizes = [1, 128], strides = [1, 1]} : vector<7x128xf32> to vector<1x128xf32>
    %104 = vector.broadcast %103 : vector<1x128xf32> to vector<16x128xf32>
    %105 = arith.mulf %102, %104 : vector<16x128xf32>
    %106 = arith.addf %95, %105 : vector<16x128xf32>
    %c15_i32 = arith.constant 15 : i32
    %107 = tpu.dynamic_rotate %45 by %c15_i32 dim 0 : vector<16x128xf32>, i32 -> vector<16x128xf32>
    %c-1_i32 = arith.constant -1 : i32
    %108 = vector.broadcast %c-1_i32 : i32 to vector<16x128xi32>
    %109 = arith.cmpi sge, %4, %108 : vector<16x128xi32>
    %c15_i32_40 = arith.constant 15 : i32
    %110 = vector.broadcast %c15_i32_40 : i32 to vector<16x128xi32>
    %111 = arith.cmpi slt, %4, %110 : vector<16x128xi32>
    %112 = arith.andi %109, %111 : vector<16x128xi1>
    %cst_41 = arith.constant 0.000000e+00 : f32
    %113 = vector.broadcast %cst_41 : f32 to vector<16x128xf32>
    %114 = arith.select %112, %107, %113 : vector<16x128xi1>, vector<16x128xf32>
    %115 = vector.extract_strided_slice %58 {offsets = [4, 0], sizes = [1, 128], strides = [1, 1]} : vector<7x128xf32> to vector<1x128xf32>
    %116 = vector.broadcast %115 : vector<1x128xf32> to vector<16x128xf32>
    %117 = arith.mulf %114, %116 : vector<16x128xf32>
    %118 = arith.addf %106, %117 : vector<16x128xf32>
    %c14_i32 = arith.constant 14 : i32
    %119 = tpu.dynamic_rotate %45 by %c14_i32 dim 0 : vector<16x128xf32>, i32 -> vector<16x128xf32>
    %c-2_i32 = arith.constant -2 : i32
    %120 = vector.broadcast %c-2_i32 : i32 to vector<16x128xi32>
    %121 = arith.cmpi sge, %4, %120 : vector<16x128xi32>
    %c14_i32_42 = arith.constant 14 : i32
    %122 = vector.broadcast %c14_i32_42 : i32 to vector<16x128xi32>
    %123 = arith.cmpi slt, %4, %122 : vector<16x128xi32>
    %124 = arith.andi %121, %123 : vector<16x128xi1>
    %cst_43 = arith.constant 0.000000e+00 : f32
    %125 = vector.broadcast %cst_43 : f32 to vector<16x128xf32>
    %126 = arith.select %124, %119, %125 : vector<16x128xi1>, vector<16x128xf32>
    %127 = vector.extract_strided_slice %58 {offsets = [5, 0], sizes = [1, 128], strides = [1, 1]} : vector<7x128xf32> to vector<1x128xf32>
    %128 = vector.broadcast %127 : vector<1x128xf32> to vector<16x128xf32>
    %129 = arith.mulf %126, %128 : vector<16x128xf32>
    %130 = arith.addf %118, %129 : vector<16x128xf32>
    %c13_i32 = arith.constant 13 : i32
    %131 = tpu.dynamic_rotate %45 by %c13_i32 dim 0 : vector<16x128xf32>, i32 -> vector<16x128xf32>
    %c-3_i32 = arith.constant -3 : i32
    %132 = vector.broadcast %c-3_i32 : i32 to vector<16x128xi32>
    %133 = arith.cmpi sge, %4, %132 : vector<16x128xi32>
    %c13_i32_44 = arith.constant 13 : i32
    %134 = vector.broadcast %c13_i32_44 : i32 to vector<16x128xi32>
    %135 = arith.cmpi slt, %4, %134 : vector<16x128xi32>
    %136 = arith.andi %133, %135 : vector<16x128xi1>
    %cst_45 = arith.constant 0.000000e+00 : f32
    %137 = vector.broadcast %cst_45 : f32 to vector<16x128xf32>
    %138 = arith.select %136, %131, %137 : vector<16x128xi1>, vector<16x128xf32>
    %139 = vector.extract_strided_slice %58 {offsets = [6, 0], sizes = [1, 128], strides = [1, 1]} : vector<7x128xf32> to vector<1x128xf32>
    %140 = vector.broadcast %139 : vector<1x128xf32> to vector<16x128xf32>
    %141 = arith.mulf %138, %140 : vector<16x128xf32>
    %142 = arith.addf %130, %141 : vector<16x128xf32>
    %143 = vector.broadcast %55 : vector<1x128xf32> to vector<16x128xf32>
    %144 = arith.addf %142, %143 : vector<16x128xf32>
    %145 = arith.negf %144 : vector<16x128xf32>
    %146 = math.exp %145 : vector<16x128xf32>
    %cst_46 = arith.constant 1.000000e+00 : f32
    %147 = vector.broadcast %cst_46 : f32 to vector<16x128xf32>
    %148 = arith.addf %147, %146 : vector<16x128xf32>
    %149 = arith.divf %147, %148 : vector<16x128xf32>
    %150 = arith.mulf %144, %149 : vector<16x128xf32>
    %151 = arith.truncf %150 : vector<16x128xf32> to vector<16x128xbf16>
    %c0_47 = arith.constant 0 : index
    %c0_48 = arith.constant 0 : index
    %152 = vector.load %arg13[%c0_47, %c0_48] : memref<128x128xbf16, #tpu.memory_space<vmem>>, vector<128x128xbf16>
    %cst_49 = arith.constant dense<0.000000e+00> : vector<16x128xf32>
    %153 = tpu.matmul %151, %152, %cst_49 {dimension_numbers = #tpu.dot_dimension_numbers<[1], [0], [0], [1], [0, 0, 1, 1], [], []>} : vector<16x128xbf16>, vector<128x128xbf16>, vector<16x128xf32> -> vector<16x128xf32>
    %c0_50 = arith.constant 0 : index
    %c0_51 = arith.constant 0 : index
    %154 = vector.load %arg14[%c0_50, %c0_51] : memref<1x128xf32, #tpu.memory_space<vmem>>, vector<1x128xf32>
    %155 = vector.broadcast %154 : vector<1x128xf32> to vector<16x128xf32>
    %156 = arith.addf %153, %155 : vector<16x128xf32>
    %c0_52 = arith.constant 0 : index
    %c0_53 = arith.constant 0 : index
    %157 = vector.load %arg15[%c0_52, %c0_53] : memref<16x128xf32, #tpu.memory_space<vmem>>, vector<16x128xf32>
    tpu.vector_store %arg15[%c0_52, %c0_53], %156 {strides = array<i32>} : memref<16x128xf32, #tpu.memory_space<vmem>>, vector<16x128xf32>,
    return
  }
  func.func @transform_0(%arg0: i32) -> (i32, i32) {
    %c0_i32 = arith.constant 0 : i32
    %c0_i32_0 = arith.constant 0 : i32
    return %arg0, %c0_i32 : i32, i32
  }
  func.func @transform_1(%arg0: i32) -> (i32, i32) {
    %c0_i32 = arith.constant 0 : i32
    %c0_i32_0 = arith.constant 0 : i32
    %c0_i32_1 = arith.constant 0 : i32
    return %c0_i32, %c0_i32_0 : i32, i32
  }
  func.func @transform_2(%arg0: i32) -> (i32, i32) {
    %c0_i32 = arith.constant 0 : i32
    %c0_i32_0 = arith.constant 0 : i32
    %c0_i32_1 = arith.constant 0 : i32
    return %c0_i32, %c0_i32_0 : i32, i32
  }
  func.func @transform_3(%arg0: i32) -> (i32, i32) {
    %c0_i32 = arith.constant 0 : i32
    %c0_i32_0 = arith.constant 0 : i32
    %c0_i32_1 = arith.constant 0 : i32
    return %c0_i32, %c0_i32_0 : i32, i32
  }
  func.func @transform_4(%arg0: i32) -> (i32, i32) {
    %c0_i32 = arith.constant 0 : i32
    %c0_i32_0 = arith.constant 0 : i32
    %c0_i32_1 = arith.constant 0 : i32
    return %c0_i32, %c0_i32_0 : i32, i32
  }
  func.func @transform_5(%arg0: i32) -> (i32, i32) {
    %c0_i32 = arith.constant 0 : i32
    %c0_i32_0 = arith.constant 0 : i32
    %c0_i32_1 = arith.constant 0 : i32
    return %c0_i32, %c0_i32_0 : i32, i32
  }
  func.func @transform_6(%arg0: i32) -> (i32, i32) {
    %c0_i32 = arith.constant 0 : i32
    %c0_i32_0 = arith.constant 0 : i32
    %c0_i32_1 = arith.constant 0 : i32
    return %c0_i32, %c0_i32_0 : i32, i32
  }
  func.func @transform_7(%arg0: i32) -> (i32, i32) {
    %c0_i32 = arith.constant 0 : i32
    %c0_i32_0 = arith.constant 0 : i32
    %c0_i32_1 = arith.constant 0 : i32
    return %c0_i32, %c0_i32_0 : i32, i32
  }
  func.func @transform_8(%arg0: i32) -> (i32, i32) {
    %c0_i32 = arith.constant 0 : i32
    %c0_i32_0 = arith.constant 0 : i32
    %c0_i32_1 = arith.constant 0 : i32
    return %c0_i32, %c0_i32_0 : i32, i32
  }
  func.func @transform_9(%arg0: i32) -> (i32, i32) {
    %c0_i32 = arith.constant 0 : i32
    %c0_i32_0 = arith.constant 0 : i32
    %c0_i32_1 = arith.constant 0 : i32
    return %c0_i32, %c0_i32_0 : i32, i32
  }
  func.func @transform_10(%arg0: i32) -> (i32, i32) {
    %c0_i32 = arith.constant 0 : i32
    %c0_i32_0 = arith.constant 0 : i32
    %c0_i32_1 = arith.constant 0 : i32
    return %c0_i32, %c0_i32_0 : i32, i32
  }
  func.func @transform_11(%arg0: i32) -> (i32, i32) {
    %c0_i32 = arith.constant 0 : i32
    %c0_i32_0 = arith.constant 0 : i32
    %c0_i32_1 = arith.constant 0 : i32
    return %c0_i32, %c0_i32_0 : i32, i32
  }
  func.func @transform_12(%arg0: i32) -> (i32, i32) {
    %c0_i32 = arith.constant 0 : i32
    %c0_i32_0 = arith.constant 0 : i32
    %c0_i32_1 = arith.constant 0 : i32
    return %c0_i32, %c0_i32_0 : i32, i32
  }
  func.func @transform_13(%arg0: i32) -> (i32, i32) {
    %c0_i32 = arith.constant 0 : i32
    %c0_i32_0 = arith.constant 0 : i32
    %c0_i32_1 = arith.constant 0 : i32
    return %c0_i32, %c0_i32_0 : i32, i32
  }
  func.func @transform_14(%arg0: i32) -> (i32, i32) {
    %c0_i32 = arith.constant 0 : i32
    %c0_i32_0 = arith.constant 0 : i32
    return %arg0, %c0_i32 : i32, i32
  }
}

</mosaic_0001>

<llo_original>
// kernel: conformer_conv_module.1
$region0: #{conformer_conv_module.1}
  #allocation0 [shape = 'u32[]', space=smem, size = 0x4, offset = 0x4, fixed_abs, tag = 'smem constant byte address 0x4 - core index']
  #allocation1 [shape = 'u32[144,128]{1,0:T(1,128)}', space=vmem, size = 0x12000, scoped, tag = 'internal scratch']
  %s0 = inlined_call_operand.vmem [shape: f32[32,128], index: 0, kind: input, shape index: {}]
  %s1 = inlined_call_operand.vmem [shape: f32[1,128], index: 1, kind: input, shape index: {}]
  %s2 = inlined_call_operand.vmem [shape: f32[1,128], index: 2, kind: input, shape index: {}]
  %s3 = inlined_call_operand.vmem [shape: bf16[128,128], index: 3, kind: input, shape index: {}]
  %s4 = inlined_call_operand.vmem [shape: f32[1,128], index: 4, kind: input, shape index: {}]
  %s5 = inlined_call_operand.vmem [shape: bf16[128,128], index: 5, kind: input, shape index: {}]
  %s6 = inlined_call_operand.vmem [shape: f32[1,128], index: 6, kind: input, shape index: {}]
  %s7 = inlined_call_operand.vmem [shape: f32[7,128], index: 7, kind: input, shape index: {}]
  %s8 = inlined_call_operand.vmem [shape: f32[1,128], index: 8, kind: input, shape index: {}]
  %s9 = inlined_call_operand.vmem [shape: f32[1,128], index: 9, kind: input, shape index: {}]
  %s10 = inlined_call_operand.vmem [shape: f32[1,128], index: 10, kind: input, shape index: {}]
  %s11 = inlined_call_operand.vmem [shape: f32[1,128], index: 11, kind: input, shape index: {}]
  %s12 = inlined_call_operand.vmem [shape: bf16[128,128], index: 12, kind: input, shape index: {}]
  %s13 = inlined_call_operand.vmem [shape: f32[1,128], index: 13, kind: input, shape index: {}]
  %s14 = inlined_call_operand.hbm [shape: f32[32,128], index: 14, kind: output, shape index: {}]
  %s15 = sld [smem:[#allocation0]]
  $region89: #{conformer_conv_module.1} parent=0
    _
  %s17 = ssub.s32 1, %s15
  %s18 = scalar_select 0, %s17, %s15
  $region1: #{conformer_conv_module.1} parent=0
    #allocation2 [shape = 'u8[16384]{0}', space=vmem, size = 0x4000, scoped, tag = 'output window, operand 0']
    #allocation3 [shape = 's32[2]{0}', space=sflag, size = 0x8, scoped, tag = 'scoped memory for conformer_conv_module.1']
    %19 = vsyncpa [#allocation3], 0
    %s20 = scalar_lea.sflag [#allocation3], 1
    %21 = vsyncpa %s20, 0
    loop: start=0, step=1, limit=4
    $region2: #{conformer_conv_module.1} parent=1 // loop_pre_header
      _
    $region3: #{conformer_conv_module.1} parent=1 // loop_header
      %s23 = sphi 0, %s27
      %p24 = scmp.ge.s32.totalorder %s23, 4
      %s33 = sphi 0, %s35
      %s36 = sphi 0, %s33
      %s37 = sphi 0, %s36
      %s53 = sphi 0, %s37
      %s57 = sphi 0, %s57
      %s59 = sphi 0, %s57
      %s60 = sphi 0, %s59
      %s74 = sphi 0, %s60
      %s78 = sphi 0, %s78
      %s80 = sphi 0, %s78
      %s81 = sphi 0, %s80
      %s95 = sphi 0, %s81
      %s99 = sphi 0, %s99
      %s101 = sphi 0, %s99
      %s102 = sphi 0, %s101
      %s116 = sphi 0, %s102
      %s120 = sphi 0, %s120
      %s122 = sphi 0, %s120
      %s123 = sphi 0, %s122
      %s137 = sphi 0, %s123
      %s141 = sphi 0, %s141
      %s143 = sphi 0, %s141
      %s144 = sphi 0, %s143
      %s158 = sphi 0, %s144
      %s162 = sphi 0, %s162
      %s164 = sphi 0, %s162
      %s165 = sphi 0, %s164
      %s179 = sphi 0, %s165
      %s183 = sphi 0, %s183
      %s185 = sphi 0, %s183
      %s186 = sphi 0, %s185
      %s200 = sphi 0, %s186
      %s204 = sphi 0, %s204
      %s206 = sphi 0, %s204
      %s207 = sphi 0, %s206
      %s221 = sphi 0, %s207
      %s225 = sphi 0, %s225
      %s227 = sphi 0, %s225
      %s228 = sphi 0, %s227
      %s242 = sphi 0, %s228
      %s246 = sphi 0, %s246
      %s248 = sphi 0, %s246
      %s249 = sphi 0, %s248
      %s263 = sphi 0, %s249
      %s267 = sphi 0, %s267
      %s269 = sphi 0, %s267
      %s270 = sphi 0, %s269
      %s284 = sphi 0, %s270
      %s288 = sphi 0, %s288
      %s290 = sphi 0, %s288
      %s291 = sphi 0, %s290
      %s305 = sphi 0, %s291
      %s309 = sphi 0, %s309
      %s311 = sphi 0, %s309
      %s312 = sphi 0, %s311
      %s326 = sphi 0, %s312
      %s332 = sphi 0, %s334
      %s335 = sphi 0, %s332
      %s336 = sphi 0, %s335
      %s352 = sphi 0, %s336
    $region4: #{conformer_conv_module.1} parent=1 // loop_header_branch
      %26 = sbr.rel (%p24) target = $region8
    $region5: #{conformer_conv_module.1} parent=1 // loop_body
      %s28 = ssub.s32 %s23, 1
      %s29 = ssub.s32 %s23, 2
      %s30 = sadd.s32 %s23, 1
      %s31 = ssub.s32 %s23, %s30
      %p32 = scmp.eq.s32.totalorder %s31, 0
      %s34 = sadd.s32 %s33, 1
      %s35 = scalar_select %p32, %s33, %s34
      %p38 = pneg %p32
      %p39 = scmp.eq.s32.totalorder %s23, 1
      %p40 = por %p38, %p39
      %p41 = scmp.ne.s32.totalorder %s33, %s36
      %p42 = scmp.eq.s32.totalorder %s23, 0
      %p43 = por %p41, %p42
      %p44 = scmp.ne.s32.totalorder %s33, %s36
      %p45 = scmp.eq.s32.totalorder %s28, 1
      %p46 = por %p44, %p45
      %p47 = scmp.ne.s32.totalorder %s36, %s37
      %p48 = scmp.eq.s32.totalorder %s28, 0
      %p49 = por %p47, %p48
      %p50 = scmp.ne.s32.totalorder %s36, %s37
      %p51 = scmp.eq.s32.totalorder %s29, 1
      %p52 = por %p50, %p51
      %p54 = scmp.ne.s32.totalorder %s37, %s53
      %p55 = scmp.eq.s32.totalorder %s29, 0
      %p56 = por %p54, %p55
      %s58 = sadd.s32 %s57, 1
      %p61 = scmp.eq.s32.totalorder %s23, 1
      %p62 = scmp.ne.s32.totalorder %s57, %s59
      %p63 = scmp.eq.s32.totalorder %s23, 0
      %p64 = por %p62, %p63
      %p65 = scmp.ne.s32.totalorder %s57, %s59
      %p66 = scmp.eq.s32.totalorder %s28, 1
      %p67 = por %p65, %p66
      %p68 = scmp.ne.s32.totalorder %s59, %s60
      %p69 = scmp.eq.s32.totalorder %s28, 0
      %p70 = por %p68, %p69
      %p71 = scmp.ne.s32.totalorder %s59, %s60
      %p72 = scmp.eq.s32.totalorder %s29, 1
      %p73 = por %p71, %p72
      %p75 = scmp.ne.s32.totalorder %s60, %s74
      %p76 = scmp.eq.s32.totalorder %s29, 0
      %p77 = por %p75, %p76
      %s79 = sadd.s32 %s78, 1
      %p82 = scmp.eq.s32.totalorder %s23, 1
      %p83 = scmp.ne.s32.totalorder %s78, %s80
      %p84 = scmp.eq.s32.totalorder %s23, 0
      %p85 = por %p83, %p84
      %p86 = scmp.ne.s32.totalorder %s78, %s80
      %p87 = scmp.eq.s32.totalorder %s28, 1
      %p88 = por %p86, %p87
      %p89 = scmp.ne.s32.totalorder %s80, %s81
      %p90 = scmp.eq.s32.totalorder %s28, 0
      %p91 = por %p89, %p90
      %p92 = scmp.ne.s32.totalorder %s80, %s81
      %p93 = scmp.eq.s32.totalorder %s29, 1
      %p94 = por %p92, %p93
      %p96 = scmp.ne.s32.totalorder %s81, %s95
      %p97 = scmp.eq.s32.totalorder %s29, 0
      %p98 = por %p96, %p97
      %s100 = sadd.s32 %s99, 1
      %p103 = scmp.eq.s32.totalorder %s23, 1
      %p104 = scmp.ne.s32.totalorder %s99, %s101
      %p105 = scmp.eq.s32.totalorder %s23, 0
      %p106 = por %p104, %p105
      %p107 = scmp.ne.s32.totalorder %s99, %s101
      %p108 = scmp.eq.s32.totalorder %s28, 1
      %p109 = por %p107, %p108
      %p110 = scmp.ne.s32.totalorder %s101, %s102
      %p111 = scmp.eq.s32.totalorder %s28, 0
      %p112 = por %p110, %p111
      %p113 = scmp.ne.s32.totalorder %s101, %s102
      %p114 = scmp.eq.s32.totalorder %s29, 1
      %p115 = por %p113, %p114
      %p117 = scmp.ne.s32.totalorder %s102, %s116
      %p118 = scmp.eq.s32.totalorder %s29, 0
      %p119 = por %p117, %p118
      %s121 = sadd.s32 %s120, 1
      %p124 = scmp.eq.s32.totalorder %s23, 1
      %p125 = scmp.ne.s32.totalorder %s120, %s122
      %p126 = scmp.eq.s32.totalorder %s23, 0
      %p127 = por %p125, %p126
      %p128 = scmp.ne.s32.totalorder %s120, %s122
      %p129 = scmp.eq.s32.totalorder %s28, 1
      %p130 = por %p128, %p129
      %p131 = scmp.ne.s32.totalorder %s122, %s123
      %p132 = scmp.eq.s32.totalorder %s28, 0
      %p133 = por %p131, %p132
      %p134 = scmp.ne.s32.totalorder %s122, %s123
      %p135 = scmp.eq.s32.totalorder %s29, 1
      %p136 = por %p134, %p135
      %p138 = scmp.ne.s32.totalorder %s123, %s137
      %p139 = scmp.eq.s32.totalorder %s29, 0
      %p140 = por %p138, %p139
      %s142 = sadd.s32 %s141, 1
      %p145 = scmp.eq.s32.totalorder %s23, 1
      %p146 = scmp.ne.s32.totalorder %s141, %s143
      %p147 = scmp.eq.s32.totalorder %s23, 0
      %p148 = por %p146, %p147
      %p149 = scmp.ne.s32.totalorder %s141, %s143
      %p150 = scmp.eq.s32.totalorder %s28, 1
      %p151 = por %p149, %p150
      %p152 = scmp.ne.s32.totalorder %s143, %s144
      %p153 = scmp.eq.s32.totalorder %s28, 0
      %p154 = por %p152, %p153
      %p155 = scmp.ne.s32.totalorder %s143, %s144
      %p156 = scmp.eq.s32.totalorder %s29, 1
      %p157 = por %p155, %p156
      %p159 = scmp.ne.s32.totalorder %s144, %s158
      %p160 = scmp.eq.s32.totalorder %s29, 0
      %p161 = por %p159, %p160
      %s163 = sadd.s32 %s162, 1
      %p166 = scmp.eq.s32.totalorder %s23, 1
      %p167 = scmp.ne.s32.totalorder %s162, %s164
      %p168 = scmp.eq.s32.totalorder %s23, 0
      %p169 = por %p167, %p168
      %p170 = scmp.ne.s32.totalorder %s162, %s164
      %p171 = scmp.eq.s32.totalorder %s28, 1
      %p172 = por %p170, %p171
      %p173 = scmp.ne.s32.totalorder %s164, %s165
      %p174 = scmp.eq.s32.totalorder %s28, 0
      %p175 = por %p173, %p174
      %p176 = scmp.ne.s32.totalorder %s164, %s165
      %p177 = scmp.eq.s32.totalorder %s29, 1
      %p178 = por %p176, %p177
      %p180 = scmp.ne.s32.totalorder %s165, %s179
      %p181 = scmp.eq.s32.totalorder %s29, 0
      %p182 = por %p180, %p181
      %s184 = sadd.s32 %s183, 1
      %p187 = scmp.eq.s32.totalorder %s23, 1
      %p188 = scmp.ne.s32.totalorder %s183, %s185
      %p189 = scmp.eq.s32.totalorder %s23, 0
      %p190 = por %p188, %p189
      %p191 = scmp.ne.s32.totalorder %s183, %s185
      %p192 = scmp.eq.s32.totalorder %s28, 1
      %p193 = por %p191, %p192
      %p194 = scmp.ne.s32.totalorder %s185, %s186
      %p195 = scmp.eq.s32.totalorder %s28, 0
      %p196 = por %p194, %p195
      %p197 = scmp.ne.s32.totalorder %s185, %s186
      %p198 = scmp.eq.s32.totalorder %s29, 1
      %p199 = por %p197, %p198
      %p201 = scmp.ne.s32.totalorder %s186, %s200
      %p202 = scmp.eq.s32.totalorder %s29, 0
      %p203 = por %p201, %p202
      %s205 = sadd.s32 %s204, 1
      %p208 = scmp.eq.s32.totalorder %s23, 1
      %p209 = scmp.ne.s32.totalorder %s204, %s206
      %p210 = scmp.eq.s32.totalorder %s23, 0
      %p211 = por %p209, %p210
      %p212 = scmp.ne.s32.totalorder %s204, %s206
      %p213 = scmp.eq.s32.totalorder %s28, 1
      %p214 = por %p212, %p213
      %p215 = scmp.ne.s32.totalorder %s206, %s207
      %p216 = scmp.eq.s32.totalorder %s28, 0
      %p217 = por %p215, %p216
      %p218 = scmp.ne.s32.totalorder %s206, %s207
      %p219 = scmp.eq.s32.totalorder %s29, 1
      %p220 = por %p218, %p219
      %p222 = scmp.ne.s32.totalorder %s207, %s221
      %p223 = scmp.eq.s32.totalorder %s29, 0
      %p224 = por %p222, %p223
      %s226 = sadd.s32 %s225, 1
      %p229 = scmp.eq.s32.totalorder %s23, 1
      %p230 = scmp.ne.s32.totalorder %s225, %s227
      %p231 = scmp.eq.s32.totalorder %s23, 0
      %p232 = por %p230, %p231
      %p233 = scmp.ne.s32.totalorder %s225, %s227
      %p234 = scmp.eq.s32.totalorder %s28, 1
      %p235 = por %p233, %p234
      %p236 = scmp.ne.s32.totalorder %s227, %s228
      %p237 = scmp.eq.s32.totalorder %s28, 0
      %p238 = por %p236, %p237
      %p239 = scmp.ne.s32.totalorder %s227, %s228
      %p240 = scmp.eq.s32.totalorder %s29, 1
      %p241 = por %p239, %p240
      %p243 = scmp.ne.s32.totalorder %s228, %s242
      %p244 = scmp.eq.s32.totalorder %s29, 0
      %p245 = por %p243, %p244
      %s247 = sadd.s32 %s246, 1
      %p250 = scmp.eq.s32.totalorder %s23, 1
      %p251 = scmp.ne.s32.totalorder %s246, %s248
      %p252 = scmp.eq.s32.totalorder %s23, 0
      %p253 = por %p251, %p252
      %p254 = scmp.ne.s32.totalorder %s246, %s248
      %p255 = scmp.eq.s32.totalorder %s28, 1
      %p256 = por %p254, %p255
      %p257 = scmp.ne.s32.totalorder %s248, %s249
      %p258 = scmp.eq.s32.totalorder %s28, 0
      %p259 = por %p257, %p258
      %p260 = scmp.ne.s32.totalorder %s248, %s249
      %p261 = scmp.eq.s32.totalorder %s29, 1
      %p262 = por %p260, %p261
      %p264 = scmp.ne.s32.totalorder %s249, %s263
      %p265 = scmp.eq.s32.totalorder %s29, 0
      %p266 = por %p264, %p265
      %s268 = sadd.s32 %s267, 1
      %p271 = scmp.eq.s32.totalorder %s23, 1
      %p272 = scmp.ne.s32.totalorder %s267, %s269
      %p273 = scmp.eq.s32.totalorder %s23, 0
      %p274 = por %p272, %p273
      %p275 = scmp.ne.s32.totalorder %s267, %s269
      %p276 = scmp.eq.s32.totalorder %s28, 1
      %p277 = por %p275, %p276
      %p278 = scmp.ne.s32.totalorder %s269, %s270
      %p279 = scmp.eq.s32.totalorder %s28, 0
      %p280 = por %p278, %p279
      %p281 = scmp.ne.s32.totalorder %s269, %s270
      %p282 = scmp.eq.s32.totalorder %s29, 1
      %p283 = por %p281, %p282
      %p285 = scmp.ne.s32.totalorder %s270, %s284
      %p286 = scmp.eq.s32.totalorder %s29, 0
      %p287 = por %p285, %p286
      %s289 = sadd.s32 %s288, 1
      %p292 = scmp.eq.s32.totalorder %s23, 1
      %p293 = scmp.ne.s32.totalorder %s288, %s290
      %p294 = scmp.eq.s32.totalorder %s23, 0
      %p295 = por %p293, %p294
      %p296 = scmp.ne.s32.totalorder %s288, %s290
      %p297 = scmp.eq.s32.totalorder %s28, 1
      %p298 = por %p296, %p297
      %p299 = scmp.ne.s32.totalorder %s290, %s291
      %p300 = scmp.eq.s32.totalorder %s28, 0
      %p301 = por %p299, %p300
      %p302 = scmp.ne.s32.totalorder %s290, %s291
      %p303 = scmp.eq.s32.totalorder %s29, 1
      %p304 = por %p302, %p303
      %p306 = scmp.ne.s32.totalorder %s291, %s305
      %p307 = scmp.eq.s32.totalorder %s29, 0
      %p308 = por %p306, %p307
      %s310 = sadd.s32 %s309, 1
      %p313 = scmp.eq.s32.totalorder %s23, 1
      %p314 = scmp.ne.s32.totalorder %s309, %s311
      %p315 = scmp.eq.s32.totalorder %s23, 0
      %p316 = por %p314, %p315
      %p317 = scmp.ne.s32.totalorder %s309, %s311
      %p318 = scmp.eq.s32.totalorder %s28, 1
      %p319 = por %p317, %p318
      %p320 = scmp.ne.s32.totalorder %s311, %s312
      %p321 = scmp.eq.s32.totalorder %s28, 0
      %p322 = por %p320, %p321
      %p323 = scmp.ne.s32.totalorder %s311, %s312
      %p324 = scmp.eq.s32.totalorder %s29, 1
      %p325 = por %p323, %p324
      %p327 = scmp.ne.s32.totalorder %s312, %s326
      %p328 = scmp.eq.s32.totalorder %s29, 0
      %p329 = por %p327, %p328
      %s330 = ssub.s32 %s23, %s30
      %p331 = scmp.eq.s32.totalorder %s330, 0
      %s333 = sadd.s32 %s332, 1
      %s334 = scalar_select %p331, %s332, %s333
      %p337 = pneg %p331
      %p338 = scmp.eq.s32.totalorder %s23, 1
      %p339 = por %p337, %p338
      %p340 = scmp.ne.s32.totalorder %s332, %s335
      %p341 = scmp.eq.s32.totalorder %s23, 0
      %p342 = por %p340, %p341
      %p343 = scmp.ne.s32.totalorder %s332, %s335
      %p344 = scmp.eq.s32.totalorder %s28, 1
      %p345 = por %p343, %p344
      %p346 = scmp.ne.s32.totalorder %s335, %s336
      %p347 = scmp.eq.s32.totalorder %s28, 0
      %p348 = por %p346, %p347
      %p349 = scmp.ne.s32.totalorder %s335, %s336
      %p350 = scmp.eq.s32.totalorder %s29, 1
      %p351 = por %p349, %p350
      %p353 = scmp.ne.s32.totalorder %s336, %s352
      %p354 = scmp.eq.s32.totalorder %s29, 0
      %p355 = por %p353, %p354
      %p356 = scmp.le.s32.totalorder 1, %s23
      %p357 = scmp.lt.s32.totalorder %s23, 3
      %p358 = pnand %p356, %p357
      %p359 = pneg %p358
      // Predicated region
      $region9: #{conformer_conv_module.1} parent=5 // pred_check
        _
      $region10: #{conformer_conv_module.1} parent=5 // pred_check_branch
        %361 = sbr.rel (%p358) target = $region12
      $region11: #{conformer_conv_module.1} parent=5 // pred_region
        %s362 = ssub.s32 %s23, 1
        // Predicated region
        $region13: #{conformer_conv_module.1} parent=11 // pred_check
          %p363 = pneg %p70
        $region14: #{conformer_conv_module.1} parent=11 // pred_check_branch
          %365 = sbr.rel (%p363) target = $region16
        $region15: #{conformer_conv_module.1} parent=11 // pred_region
          _
        $region16: #{conformer_conv_module.1} parent=11 // pred_fallthru
          _
        // Predicated region
        $region17: #{conformer_conv_module.1} parent=11 // pred_check
          %p366 = pneg %p91
        $region18: #{conformer_conv_module.1} parent=11 // pred_check_branch
          %368 = sbr.rel (%p366) target = $region20
        $region19: #{conformer_conv_module.1} parent=11 // pred_region
          _
        $region20: #{conformer_conv_module.1} parent=11 // pred_fallthru
          _
        // Predicated region
        $region21: #{conformer_conv_module.1} parent=11 // pred_check
          %p369 = pneg %p112
        $region22: #{conformer_conv_module.1} parent=11 // pred_check_branch
          %371 = sbr.rel (%p369) target = $region24
        $region23: #{conformer_conv_module.1} parent=11 // pred_region
          _
        $region24: #{conformer_conv_module.1} parent=11 // pred_fallthru
          _
        // Predicated region
        $region25: #{conformer_conv_module.1} parent=11 // pred_check
          %p372 = pneg %p133
        $region26: #{conformer_conv_module.1} parent=11 // pred_check_branch
          %374 = sbr.rel (%p372) target = $region28
        $region27: #{conformer_conv_module.1} parent=11 // pred_region
          _
        $region28: #{conformer_conv_module.1} parent=11 // pred_fallthru
          _
        // Predicated region
        $region29: #{conformer_conv_module.1} parent=11 // pred_check
          %p375 = pneg %p154
        $region30: #{conformer_conv_module.1} parent=11 // pred_check_branch
          %377 = sbr.rel (%p375) target = $region32
        $region31: #{conformer_conv_module.1} parent=11 // pred_region
          _
        $region32: #{conformer_conv_module.1} parent=11 // pred_fallthru
          _
        // Predicated region
        $region33: #{conformer_conv_module.1} parent=11 // pred_check
          %p378 = pneg %p175
        $region34: #{conformer_conv_module.1} parent=11 // pred_check_branch
          %380 = sbr.rel (%p378) target = $region36
        $region35: #{conformer_conv_module.1} parent=11 // pred_region
          _
        $region36: #{conformer_conv_module.1} parent=11 // pred_fallthru
          _
        // Predicated region
        $region37: #{conformer_conv_module.1} parent=11 // pred_check
          %p381 = pneg %p196
        $region38: #{conformer_conv_module.1} parent=11 // pred_check_branch
          %383 = sbr.rel (%p381) target = $region40
        $region39: #{conformer_conv_module.1} parent=11 // pred_region
          _
        $region40: #{conformer_conv_module.1} parent=11 // pred_fallthru
          _
        // Predicated region
        $region41: #{conformer_conv_module.1} parent=11 // pred_check
          %p384 = pneg %p217
        $region42: #{conformer_conv_module.1} parent=11 // pred_check_branch
          %386 = sbr.rel (%p384) target = $region44
        $region43: #{conformer_conv_module.1} parent=11 // pred_region
          _
        $region44: #{conformer_conv_module.1} parent=11 // pred_fallthru
          _
        // Predicated region
        $region45: #{conformer_conv_module.1} parent=11 // pred_check
          %p387 = pneg %p238
        $region46: #{conformer_conv_module.1} parent=11 // pred_check_branch
          %389 = sbr.rel (%p387) target = $region48
        $region47: #{conformer_conv_module.1} parent=11 // pred_region
          _
        $region48: #{conformer_conv_module.1} parent=11 // pred_fallthru
          _
        // Predicated region
        $region49: #{conformer_conv_module.1} parent=11 // pred_check
          %p390 = pneg %p259
        $region50: #{conformer_conv_module.1} parent=11 // pred_check_branch
          %392 = sbr.rel (%p390) target = $region52
        $region51: #{conformer_conv_module.1} parent=11 // pred_region
          _
        $region52: #{conformer_conv_module.1} parent=11 // pred_fallthru
          _
        // Predicated region
        $region53: #{conformer_conv_module.1} parent=11 // pred_check
          %p393 = pneg %p280
        $region54: #{conformer_conv_module.1} parent=11 // pred_check_branch
          %395 = sbr.rel (%p393) target = $region56
        $region55: #{conformer_conv_module.1} parent=11 // pred_region
          _
        $region56: #{conformer_conv_module.1} parent=11 // pred_fallthru
          _
        // Predicated region
        $region57: #{conformer_conv_module.1} parent=11 // pred_check
          %p396 = pneg %p301
        $region58: #{conformer_conv_module.1} parent=11 // pred_check_branch
          %398 = sbr.rel (%p396) target = $region60
        $region59: #{conformer_conv_module.1} parent=11 // pred_region
          _
        $region60: #{conformer_conv_module.1} parent=11 // pred_fallthru
          _
        // Predicated region
        $region61: #{conformer_conv_module.1} parent=11 // pred_check
          %p399 = pneg %p322
        $region62: #{conformer_conv_module.1} parent=11 // pred_check_branch
          %401 = sbr.rel (%p399) target = $region64
        $region63: #{conformer_conv_module.1} parent=11 // pred_region
          _
        $region64: #{conformer_conv_module.1} parent=11 // pred_fallthru
          _
      $region12: #{conformer_conv_module.1} parent=5 // pred_fallthru
        _
      %p402 = scmp.lt.s32.totalorder %s23, 2
      // Predicated region
      $region65: #{conformer_conv_module.1} parent=5 // pred_check
        %p403 = pneg %p402
      $region66: #{conformer_conv_module.1} parent=5 // pred_check_branch
        %405 = sbr.rel (%p403) target = $region68
      $region67: #{conformer_conv_module.1} parent=5 // pred_region
        // Predicated region
        $region69: #{conformer_conv_module.1} parent=67 // pred_check
          %p406 = pneg %p43
        $region70: #{conformer_conv_module.1} parent=67 // pred_check_branch
          %408 = sbr.rel (%p406) target = $region72
        $region71: #{conformer_conv_module.1} parent=67 // pred_region
          %s409 = smul.u32 2, %s23
          %p410 = scmp.lt.s32.totalorder %s409, 3
          %s411 = scalar_select %p410, %s409, 3
          %s412 = smul.addr %s411, 8
          %s413 = scalar_lea.vmem %s0, %s412
          %s414 = smul.u32 2, %s23
        $region72: #{conformer_conv_module.1} parent=67 // pred_fallthru
          _
      $region68: #{conformer_conv_module.1} parent=5 // pred_fallthru
        _
      %p415 = scmp.le.s32.totalorder 1, %s23
      %p416 = scmp.lt.s32.totalorder %s23, 3
      %p417 = pnand %p415, %p416
      %p418 = pneg %p417
      // Predicated region
      $region73: #{conformer_conv_module.1} parent=5 // pred_check
        _
      $region74: #{conformer_conv_module.1} parent=5 // pred_check_branch
        %420 = sbr.rel (%p417) target = $region76
      $region75: #{conformer_conv_module.1} parent=5 // pred_region
        %s421 = ssub.s32 %s23, 1
        %s422 = smul.u32 2, %s28
        %p423 = scmp.lt.s32.totalorder %s422, 3
        %s424 = scalar_select %p423, %s422, 3
        %s425 = smul.addr %s424, 8
        %s426 = scalar_lea.vmem %s0, %s425
        %p427 = pneg %p49
        %p428 = pneg %p46
        %p429 = pneg %p70
        %p430 = pneg %p67
        %p431 = pneg %p91
        %p432 = pneg %p88
        %p433 = pneg %p112
        %p434 = pneg %p109
        %p435 = pneg %p133
        %p436 = pneg %p130
        %p437 = pneg %p154
        %p438 = pneg %p151
        %p439 = pneg %p175
        %p440 = pneg %p172
        %p441 = pneg %p196
        %p442 = pneg %p193
        %p443 = pneg %p217
        %p444 = pneg %p214
        %p445 = pneg %p238
        %p446 = pneg %p235
        %p447 = pneg %p259
        %p448 = pneg %p256
        %p449 = pneg %p280
        %p450 = pneg %p277
        %p451 = pneg %p301
        %p452 = pneg %p298
        %p453 = pneg %p322
        %p454 = pneg %p319
        %p455 = pneg %p348
        %p456 = pneg %p345
        %s457 = sand.u32 %s335, 1
        %s458 = scalar_lea.sflag [#allocation3], %s457
        %s459 = sand.u32 %s335, 1
        %s460 = smul.addr %s459, 16
        %s461 = scalar_lea.vmem [#allocation2], %s460
        %s462 = smul.u32 2, %s28
        %p463 = scmp.lt.s32.totalorder %s462, 3
        %s464 = scalar_select %p463, %s462, 3
        %s465 = smul.addr %s464, 8
        %s466 = scalar_lea.vmem %s0, %s465
        %s467 = smul.u32 2, %s28
        %s468 = smul.u32 2, %s28
        %v470 = vld [vmem:[%s466] sm:$0xff]
        %v471 = vld [vmem:[%s466 + $0x8] sm:$0xff]
        %v472 = vlaneseq
        %v473 = vand.u32 %v472, 127
        %vm474 = vcmp.lt.s32.totalorder %v473, 32
        %v475 = vlaneseq
        %v476 = vshrl.u32 %v475, 7
        %v477 = vadd.s32 %v476, 8
        %478 = vadd.xlane.f32.xlu0 %v470
        %v479 = vpop.xlane.xlu0 %478
        %480 = vadd.xlane.f32.xlu0 %v471
        %v481 = vpop.xlane.xlu0 %480
        %v482 = vmul.f32 %v479, 0.03125
        %v483 = vmul.f32 %v481, 0.03125
        %v484 = vsub.f32 %v470, %v482
        %v485 = vsub.f32 %v471, %v483
        %v486 = vsel %vm474, %v484, 0.0
        %v487 = vsel %vm474, %v485, 0.0
        %v488 = vmul.f32 %v486, %v486
        %v489 = vmul.f32 %v487, %v487
        %490 = vadd.xlane.f32.xlu0 %v488
        %v491 = vpop.xlane.xlu0 %490
        %492 = vadd.xlane.f32.xlu0 %v489
        %v493 = vpop.xlane.xlu0 %492
        %v494 = vmul.f32 %v491, 0.03125
        %v495 = vmul.f32 %v493, 0.03125
        %v496 = vadd.f32 %v494, 1e-05
        %v497 = vadd.f32 %v495, 1e-05
        %v498 = vrsqrt.pop %v496
        %v499 = vrsqrt.pop %v497
        %v500 = vmul.f32 %v486, %v498
        %v501 = vmul.f32 %v487, %v499
        %v502 = vld [vmem:[%s1] sm:$0x1]
        %v504 = vlaneseq
        %v505 = vshrl.u32 %v504, 7
        %v506 = vsub.s32 0, %v505
        %v507 = vrot.slane %v502, %v506
        %v509 = vmul.f32 %v500, %v507
        %v510 = vmul.f32 %v501, %v507
        %v511 = vld [vmem:[%s2] sm:$0x1]
        %v513 = vlaneseq
        %v514 = vshrl.u32 %v513, 7
        %v515 = vsub.s32 0, %v514
        %v516 = vrot.slane %v511, %v515
        %v518 = vadd.f32 %v509, %v516
        %v519 = vadd.f32 %v510, %v516
        %v520 = vpack.c.bf16 %v519, %v518
        %v521 = vld [vmem:[%s3] sm:$0xf]
        %v522 = vld [vmem:[%s3 + $0x4] sm:$0xf]
        %v523 = vld [vmem:[%s3 + $0x8] sm:$0xf]
        %v524 = vld [vmem:[%s3 + $0xc] sm:$0xf]
        %v525 = vld [vmem:[%s3 + $0x10] sm:$0xf]
        %v526 = vld [vmem:[%s3 + $0x14] sm:$0xf]
        %v527 = vld [vmem:[%s3 + $0x18] sm:$0xf]
        %v528 = vld [vmem:[%s3 + $0x1c] sm:$0xf]
        %v529 = vld [vmem:[%s3 + $0x20] sm:$0xf]
        %v530 = vld [vmem:[%s3 + $0x24] sm:$0xf]
        %v531 = vld [vmem:[%s3 + $0x28] sm:$0xf]
        %v532 = vld [vmem:[%s3 + $0x2c] sm:$0xf]
        %v533 = vld [vmem:[%s3 + $0x30] sm:$0xf]
        %v534 = vld [vmem:[%s3 + $0x34] sm:$0xf]
        %v535 = vld [vmem:[%s3 + $0x38] sm:$0xf]
        %v536 = vld [vmem:[%s3 + $0x3c] sm:$0xf]
        %v537 = vld [vmem:[%s4] sm:$0x1]
        %v539 = vlaneseq
        %v540 = vshrl.u32 %v539, 7
        %v541 = vsub.s32 0, %v540
        %v542 = vrot.slane %v537, %v541
        %v560 = vunpack.c.l.b16 %v521
        %v561 = vunpack.c.l.b16 %v522
        %v562 = vunpack.c.l.b16 %v523
        %v563 = vunpack.c.l.b16 %v524
        %v564 = vunpack.c.l.b16 %v525
        %v565 = vunpack.c.l.b16 %v526
        %v566 = vunpack.c.l.b16 %v527
        %v567 = vunpack.c.l.b16 %v528
        %v568 = vunpack.c.l.b16 %v529
        %v569 = vunpack.c.l.b16 %v530
        %v570 = vunpack.c.l.b16 %v531
        %v571 = vunpack.c.l.b16 %v532
        %v572 = vunpack.c.l.b16 %v533
        %v573 = vunpack.c.l.b16 %v534
        %v574 = vunpack.c.l.b16 %v535
        %v575 = vunpack.c.l.b16 %v536
        %v576 = vpack.c.b16 %v561, %v560
        %v577 = vpack.c.b16 %v563, %v562
        %v578 = vpack.c.b16 %v565, %v564
        %v579 = vpack.c.b16 %v567, %v566
        %v580 = vpack.c.b16 %v569, %v568
        %v581 = vpack.c.b16 %v571, %v570
        %v582 = vpack.c.b16 %v573, %v572
        %v583 = vpack.c.b16 %v575, %v574
        %592 = vmatprep.subr.bf16.mxu0 0
        %593 = vmatpush1.bf16.msra.mxu0 %v576
        %594 = vmatprep.subr.bf16.mxu0 0
        %595 = vmatpush1.bf16.msra.mxu0 %v577
        %596 = vmatprep.subr.bf16.mxu0 0
        %597 = vmatpush1.bf16.msra.mxu0 %v578
        %598 = vmatprep.subr.bf16.mxu0 0
        %599 = vmatpush1.bf16.msra.mxu0 %v579
        %600 = vmatprep.subr.bf16.mxu0 0
        %601 = vmatpush1.bf16.msra.mxu0 %v580
        %602 = vmatprep.subr.bf16.mxu0 0
        %603 = vmatpush1.bf16.msra.mxu0 %v581
        %604 = vmatprep.subr.bf16.mxu0 0
        %605 = vmatpush1.bf16.msra.mxu0 %v582
        %606 = vmatprep.subr.bf16.mxu0 0
        %607 = vmatpush1.bf16.msra.mxu0 %v583
        %608 = vmatprep.subr.bf16.mxu0 0
        %609 = vmatpush1.bf16.msra.mxu0 0
        %610 = vmatprep.subr.bf16.mxu0 0
        %611 = vmatpush1.bf16.msra.mxu0 0
        %612 = vmatprep.subr.bf16.mxu0 0
        %613 = vmatpush1.bf16.msra.mxu0 0
        %614 = vmatprep.subr.bf16.mxu0 0
        %615 = vmatpush1.bf16.msra.mxu0 0
        %616 = vmatprep.subr.bf16.mxu0 0
        %617 = vmatpush1.bf16.msra.mxu0 0
        %618 = vmatprep.subr.bf16.mxu0 0
        %619 = vmatpush1.bf16.msra.mxu0 0
        %620 = vmatprep.subr.bf16.mxu0 0
        %621 = vmatpush1.bf16.msra.mxu0 0
        %622 = vmatprep.subr.bf16.mxu0 0
        %623 = vmatpush1.bf16.msra.mxu0 0
        %624 = vmatprep.mubr.bf16.mxu0 0
        %625 = vmatmul.mubr.bf16.gmra.mrb[0].mxu0 %v520
        %v626 = vpop.f32.mrb[0].mxu0
        %v627 = vadd.f32 %v542, %v626
        %v628 = vpop.f32.mrb[0].mxu0
        %v629 = vpop.f32.mrb[0].mxu0
        %v630 = vadd.f32 %v542, %v629
        %v631 = vpop.f32.mrb[0].mxu0
        %632 = vdwg.mxu0
        %v633 = vld [vmem:[%s5] sm:$0xf]
        %v634 = vld [vmem:[%s5 + $0x4] sm:$0xf]
        %v635 = vld [vmem:[%s5 + $0x8] sm:$0xf]
        %v636 = vld [vmem:[%s5 + $0xc] sm:$0xf]
        %v637 = vld [vmem:[%s5 + $0x10] sm:$0xf]
        %v638 = vld [vmem:[%s5 + $0x14] sm:$0xf]
        %v639 = vld [vmem:[%s5 + $0x18] sm:$0xf]
        %v640 = vld [vmem:[%s5 + $0x1c] sm:$0xf]
        %v641 = vld [vmem:[%s5 + $0x20] sm:$0xf]
        %v642 = vld [vmem:[%s5 + $0x24] sm:$0xf]
        %v643 = vld [vmem:[%s5 + $0x28] sm:$0xf]
        %v644 = vld [vmem:[%s5 + $0x2c] sm:$0xf]
        %v645 = vld [vmem:[%s5 + $0x30] sm:$0xf]
        %v646 = vld [vmem:[%s5 + $0x34] sm:$0xf]
        %v647 = vld [vmem:[%s5 + $0x38] sm:$0xf]
        %v648 = vld [vmem:[%s5 + $0x3c] sm:$0xf]
        %v649 = vld [vmem:[%s6] sm:$0x1]
        %v651 = vlaneseq
        %v652 = vshrl.u32 %v651, 7
        %v653 = vsub.s32 0, %v652
        %v654 = vrot.slane %v649, %v653
        %v672 = vunpack.c.l.b16 %v633
        %v673 = vunpack.c.l.b16 %v634
        %v674 = vunpack.c.l.b16 %v635
        %v675 = vunpack.c.l.b16 %v636
        %v676 = vunpack.c.l.b16 %v637
        %v677 = vunpack.c.l.b16 %v638
        %v678 = vunpack.c.l.b16 %v639
        %v679 = vunpack.c.l.b16 %v640
        %v680 = vunpack.c.l.b16 %v641
        %v681 = vunpack.c.l.b16 %v642
        %v682 = vunpack.c.l.b16 %v643
        %v683 = vunpack.c.l.b16 %v644
        %v684 = vunpack.c.l.b16 %v645
        %v685 = vunpack.c.l.b16 %v646
        %v686 = vunpack.c.l.b16 %v647
        %v687 = vunpack.c.l.b16 %v648
        %v688 = vpack.c.b16 %v673, %v672
        %v689 = vpack.c.b16 %v675, %v674
        %v690 = vpack.c.b16 %v677, %v676
        %v691 = vpack.c.b16 %v679, %v678
        %v692 = vpack.c.b16 %v681, %v680
        %v693 = vpack.c.b16 %v683, %v682
        %v694 = vpack.c.b16 %v685, %v684
        %v695 = vpack.c.b16 %v687, %v686
        %704 = vmatprep.subr.bf16.mxu0 0
        %705 = vmatpush1.bf16.msra.mxu0 %v688
        %706 = vmatprep.subr.bf16.mxu0 0
        %707 = vmatpush1.bf16.msra.mxu0 %v689
        %708 = vmatprep.subr.bf16.mxu0 0
        %709 = vmatpush1.bf16.msra.mxu0 %v690
        %710 = vmatprep.subr.bf16.mxu0 0
        %711 = vmatpush1.bf16.msra.mxu0 %v691
        %712 = vmatprep.subr.bf16.mxu0 0
        %713 = vmatpush1.bf16.msra.mxu0 %v692
        %714 = vmatprep.subr.bf16.mxu0 0
        %715 = vmatpush1.bf16.msra.mxu0 %v693
        %716 = vmatprep.subr.bf16.mxu0 0
        %717 = vmatpush1.bf16.msra.mxu0 %v694
        %718 = vmatprep.subr.bf16.mxu0 0
        %719 = vmatpush1.bf16.msra.mxu0 %v695
        %720 = vmatprep.subr.bf16.mxu0 0
        %721 = vmatpush1.bf16.msra.mxu0 0
        %722 = vmatprep.subr.bf16.mxu0 0
        %723 = vmatpush1.bf16.msra.mxu0 0
        %724 = vmatprep.subr.bf16.mxu0 0
        %725 = vmatpush1.bf16.msra.mxu0 0
        %726 = vmatprep.subr.bf16.mxu0 0
        %727 = vmatpush1.bf16.msra.mxu0 0
        %728 = vmatprep.subr.bf16.mxu0 0
        %729 = vmatpush1.bf16.msra.mxu0 0
        %730 = vmatprep.subr.bf16.mxu0 0
        %731 = vmatpush1.bf16.msra.mxu0 0
        %732 = vmatprep.subr.bf16.mxu0 0
        %733 = vmatpush1.bf16.msra.mxu0 0
        %734 = vmatprep.subr.bf16.mxu0 0
        %735 = vmatpush1.bf16.msra.mxu0 0
        %736 = vmatprep.mubr.bf16.mxu0 0
        %737 = vmatmul.mubr.bf16.gmra.mrb[0].mxu0 %v520
        %v738 = vpop.f32.mrb[0].mxu0
        %v739 = vadd.f32 %v654, %v738
        %v740 = vpop.f32.mrb[0].mxu0
        %v741 = vpop.f32.mrb[0].mxu0
        %v742 = vadd.f32 %v654, %v741
        %v743 = vpop.f32.mrb[0].mxu0
        %744 = vdwg.mxu0
        %v745 = vxor.u32 %v739, 2147483648
        %v746 = vxor.u32 %v742, 2147483648
        %v747 = vmul.f32 %v745, 1.442695
        %v748 = vpow.pop %v747
        %v749 = vmul.f32 %v746, 1.442695
        %v750 = vpow.pop %v749
        %v751 = vadd.f32 %v748, 1.0
        %v752 = vadd.f32 %v750, 1.0
        %v753 = vrcp.pop %v751
        %v754 = vmul.f32 1.0, %v753
        %v755 = vrcp.pop %v752
        %v756 = vmul.f32 1.0, %v755
        %v757 = vmul.f32 %v627, %v754
        %v758 = vmul.f32 %v630, %v756
        %v759 = vld [vmem:[%s8] sm:$0x1]
        %v760 = vld [vmem:[%s11] sm:$0x1]
        %v761 = vadd.f32 %v760, 1e-05
        %v762 = vrsqrt.pop %v761
        %v763 = vmul.f32 %v759, %v762
        %v764 = vld [vmem:[%s9] sm:$0x1]
        %v765 = vld [vmem:[%s10] sm:$0x1]
        %v766 = vmul.f32 %v765, %v763
        %v767 = vsub.f32 %v764, %v766
        %v768 = vld [vmem:[%s7] sm:$0x7f]
        %v770 = vlaneseq
        %v771 = vshrl.u32 %v770, 7
        %v772 = vsub.s32 0, %v771
        %v773 = vrot.slane %v763, %v772
        %v775 = vmul.f32 %v768, %v773
        %v776 = vrot.slane %v757, 5
        %v777 = vrot.slane %v758, 5
        %vm778 = vcmp.lt.s32.totalorder %v476, 3
        %v779 = vsel %vm778, %v776, %v777
        %v780 = vsel %vm778, %v777, %v776
        %vm781 = vcmp.ge.s32.totalorder %v476, 3
        %vm782 = vcmp.ge.s32.totalorder %v477, 3
        %vm783 = vcmp.lt.s32.totalorder %v476, 19
        %vm784 = vcmp.lt.s32.totalorder %v477, 19
        %vm785 = vmand %vm781, %vm783
        %vm786 = vmand %vm782, %vm784
        %v787 = vsel %vm785, %v780, 0.0
        %v788 = vsel %vm786, %v779, 0.0
        %v789 = vlaneseq
        %v790 = vshrl.u32 %v789, 7
        %v791 = vsub.s32 0, %v790
        %v792 = vrot.slane %v775, %v791
        %v793 = vmul.f32 %v787, %v792
        %v794 = vmul.f32 %v788, %v792
        %v795 = vadd.f32 %v793, 0.0
        %v796 = vadd.f32 %v794, 0.0
        %v797 = vrot.slane %v757, 6
        %v798 = vrot.slane %v758, 6
        %vm799 = vcmp.lt.s32.totalorder %v476, 2
        %v800 = vsel %vm799, %v797, %v798
        %v801 = vsel %vm799, %v798, %v797
        %vm802 = vcmp.ge.s32.totalorder %v476, 2
        %vm803 = vcmp.ge.s32.totalorder %v477, 2
        %vm804 = vcmp.lt.s32.totalorder %v476, 18
        %vm805 = vcmp.lt.s32.totalorder %v477, 18
        %vm806 = vmand %vm802, %vm804
        %vm807 = vmand %vm803, %vm805
        %v808 = vsel %vm806, %v801, 0.0
        %v809 = vsel %vm807, %v800, 0.0
        %v810 = vlaneseq
        %v811 = vshrl.u32 %v810, 7
        %v812 = vsub.s32 1, %v811
        %v813 = vrot.slane %v775, %v812
        %v814 = vmul.f32 %v808, %v813
        %v815 = vmul.f32 %v809, %v813
        %v816 = vadd.f32 %v795, %v814
        %v817 = vadd.f32 %v796, %v815
        %v818 = vrot.slane %v757, 7
        %v819 = vrot.slane %v758, 7
        %vm820 = vcmp.lt.s32.totalorder %v476, 1
        %v821 = vsel %vm820, %v818, %v819
        %v822 = vsel %vm820, %v819, %v818
        %vm823 = vcmp.ge.s32.totalorder %v476, 1
        %vm824 = vcmp.ge.s32.totalorder %v477, 1
        %vm825 = vcmp.lt.s32.totalorder %v476, 17
        %vm826 = vcmp.lt.s32.totalorder %v477, 17
        %vm827 = vmand %vm823, %vm825
        %vm828 = vmand %vm824, %vm826
        %v829 = vsel %vm827, %v822, 0.0
        %v830 = vsel %vm828, %v821, 0.0
        %v831 = vlaneseq
        %v832 = vshrl.u32 %v831, 7
        %v833 = vsub.s32 2, %v832
        %v834 = vrot.slane %v775, %v833
        %v835 = vmul.f32 %v829, %v834
        %v836 = vmul.f32 %v830, %v834
        %v837 = vadd.f32 %v816, %v835
        %v838 = vadd.f32 %v817, %v836
        %vm839 = vcmp.ge.s32.totalorder %v476, 0
        %vm840 = vcmp.ge.s32.totalorder %v477, 0
        %vm841 = vcmp.lt.s32.totalorder %v476, 16
        %vm842 = vcmp.lt.s32.totalorder %v477, 16
        %vm843 = vmand %vm839, %vm841
        %vm844 = vmand %vm840, %vm842
        %v845 = vsel %vm843, %v757, 0.0
        %v846 = vsel %vm844, %v758, 0.0
        %v847 = vlaneseq
        %v848 = vshrl.u32 %v847, 7
        %v849 = vsub.s32 3, %v848
        %v850 = vrot.slane %v775, %v849
        %v851 = vmul.f32 %v845, %v850
        %v852 = vmul.f32 %v846, %v850
        %v853 = vadd.f32 %v837, %v851
        %v854 = vadd.f32 %v838, %v852
        %v855 = vrot.slane %v757, 1
        %v856 = vrot.slane %v758, 1
        %vm857 = vcmp.lt.s32.totalorder %v476, 7
        %v858 = vsel %vm857, %v855, %v856
        %v859 = vsel %vm857, %v856, %v855
        %vm860 = vcmp.ge.s32.totalorder %v476, 4294967295
        %vm861 = vcmp.ge.s32.totalorder %v477, 4294967295
        %vm862 = vcmp.lt.s32.totalorder %v476, 15
        %vm863 = vcmp.lt.s32.totalorder %v477, 15
        %vm864 = vmand %vm860, %vm862
        %vm865 = vmand %vm861, %vm863
        %v866 = vsel %vm864, %v858, 0.0
        %v867 = vsel %vm865, %v859, 0.0
        %v868 = vlaneseq
        %v869 = vshrl.u32 %v868, 7
        %v870 = vsub.s32 4, %v869
        %v871 = vrot.slane %v775, %v870
        %v872 = vmul.f32 %v866, %v871
        %v873 = vmul.f32 %v867, %v871
        %v874 = vadd.f32 %v853, %v872
        %v875 = vadd.f32 %v854, %v873
        %v876 = vrot.slane %v757, 2
        %v877 = vrot.slane %v758, 2
        %vm878 = vcmp.lt.s32.totalorder %v476, 6
        %v879 = vsel %vm878, %v876, %v877
        %v880 = vsel %vm878, %v877, %v876
        %vm881 = vcmp.ge.s32.totalorder %v476, 4294967294
        %vm882 = vcmp.ge.s32.totalorder %v477, 4294967294
        %vm883 = vcmp.lt.s32.totalorder %v476, 14
        %vm884 = vcmp.lt.s32.totalorder %v477, 14
        %vm885 = vmand %vm881, %vm883
        %vm886 = vmand %vm882, %vm884
        %v887 = vsel %vm885, %v879, 0.0
        %v888 = vsel %vm886, %v880, 0.0
        %v889 = vlaneseq
        %v890 = vshrl.u32 %v889, 7
        %v891 = vsub.s32 5, %v890
        %v892 = vrot.slane %v775, %v891
        %v893 = vmul.f32 %v887, %v892
        %v894 = vmul.f32 %v888, %v892
        %v895 = vadd.f32 %v874, %v893
        %v896 = vadd.f32 %v875, %v894
        %v897 = vrot.slane %v757, 3
        %v898 = vrot.slane %v758, 3
        %vm899 = vcmp.lt.s32.totalorder %v476, 5
        %v900 = vsel %vm899, %v897, %v898
        %v901 = vsel %vm899, %v898, %v897
        %vm902 = vcmp.ge.s32.totalorder %v476, 4294967293
        %vm903 = vcmp.ge.s32.totalorder %v477, 4294967293
        %vm904 = vcmp.lt.s32.totalorder %v476, 13
        %vm905 = vcmp.lt.s32.totalorder %v477, 13
        %vm906 = vmand %vm902, %vm904
        %vm907 = vmand %vm903, %vm905
        %v908 = vsel %vm906, %v900, 0.0
        %v909 = vsel %vm907, %v901, 0.0
        %v910 = vlaneseq
        %v911 = vshrl.u32 %v910, 7
        %v912 = vsub.s32 6, %v911
        %v913 = vrot.slane %v775, %v912
        %v914 = vmul.f32 %v908, %v913
        %v915 = vmul.f32 %v909, %v913
        %v916 = vadd.f32 %v895, %v914
        %v917 = vadd.f32 %v896, %v915
        %v919 = vlaneseq
        %v920 = vshrl.u32 %v919, 7
        %v921 = vsub.s32 0, %v920
        %v922 = vrot.slane %v767, %v921
        %v924 = vadd.f32 %v916, %v922
        %v925 = vadd.f32 %v917, %v922
        %v926 = vxor.u32 %v924, 2147483648
        %v927 = vxor.u32 %v925, 2147483648
        %v928 = vmul.f32 %v926, 1.442695
        %v929 = vpow.pop %v928
        %v930 = vmul.f32 %v927, 1.442695
        %v931 = vpow.pop %v930
        %v932 = vadd.f32 %v929, 1.0
        %v933 = vadd.f32 %v931, 1.0
        %v934 = vrcp.pop %v932
        %v935 = vmul.f32 1.0, %v934
        %v936 = vrcp.pop %v933
        %v937 = vmul.f32 1.0, %v936
        %v938 = vmul.f32 %v924, %v935
        %v939 = vmul.f32 %v925, %v937
        %v940 = vpack.c.bf16 %v939, %v938
        %v941 = vld [vmem:[%s12] sm:$0xf]
        %v942 = vld [vmem:[%s12 + $0x4] sm:$0xf]
        %v943 = vld [vmem:[%s12 + $0x8] sm:$0xf]
        %v944 = vld [vmem:[%s12 + $0xc] sm:$0xf]
        %v945 = vld [vmem:[%s12 + $0x10] sm:$0xf]
        %v946 = vld [vmem:[%s12 + $0x14] sm:$0xf]
        %v947 = vld [vmem:[%s12 + $0x18] sm:$0xf]
        %v948 = vld [vmem:[%s12 + $0x1c] sm:$0xf]
        %v949 = vld [vmem:[%s12 + $0x20] sm:$0xf]
        %v950 = vld [vmem:[%s12 + $0x24] sm:$0xf]
        %v951 = vld [vmem:[%s12 + $0x28] sm:$0xf]
        %v952 = vld [vmem:[%s12 + $0x2c] sm:$0xf]
        %v953 = vld [vmem:[%s12 + $0x30] sm:$0xf]
        %v954 = vld [vmem:[%s12 + $0x34] sm:$0xf]
        %v955 = vld [vmem:[%s12 + $0x38] sm:$0xf]
        %v956 = vld [vmem:[%s12 + $0x3c] sm:$0xf]
        %v957 = vld [vmem:[%s13] sm:$0x1]
        %v959 = vlaneseq
        %v960 = vshrl.u32 %v959, 7
        %v961 = vsub.s32 0, %v960
        %v962 = vrot.slane %v957, %v961
        %v980 = vunpack.c.l.b16 %v941
        %v981 = vunpack.c.l.b16 %v942
        %v982 = vunpack.c.l.b16 %v943
        %v983 = vunpack.c.l.b16 %v944
        %v984 = vunpack.c.l.b16 %v945
        %v985 = vunpack.c.l.b16 %v946
        %v986 = vunpack.c.l.b16 %v947
        %v987 = vunpack.c.l.b16 %v948
        %v988 = vunpack.c.l.b16 %v949
        %v989 = vunpack.c.l.b16 %v950
        %v990 = vunpack.c.l.b16 %v951
        %v991 = vunpack.c.l.b16 %v952
        %v992 = vunpack.c.l.b16 %v953
        %v993 = vunpack.c.l.b16 %v954
        %v994 = vunpack.c.l.b16 %v955
        %v995 = vunpack.c.l.b16 %v956
        %v996 = vpack.c.b16 %v981, %v980
        %v997 = vpack.c.b16 %v983, %v982
        %v998 = vpack.c.b16 %v985, %v984
        %v999 = vpack.c.b16 %v987, %v986
        %v1000 = vpack.c.b16 %v989, %v988
        %v1001 = vpack.c.b16 %v991, %v990
        %v1002 = vpack.c.b16 %v993, %v992
        %v1003 = vpack.c.b16 %v995, %v994
        %1012 = vmatprep.subr.bf16.mxu0 0
        %1013 = vmatpush1.bf16.msra.mxu0 %v996
        %1014 = vmatprep.subr.bf16.mxu0 0
        %1015 = vmatpush1.bf16.msra.mxu0 %v997
        %1016 = vmatprep.subr.bf16.mxu0 0
        %1017 = vmatpush1.bf16.msra.mxu0 %v998
        %1018 = vmatprep.subr.bf16.mxu0 0
        %1019 = vmatpush1.bf16.msra.mxu0 %v999
        %1020 = vmatprep.subr.bf16.mxu0 0
        %1021 = vmatpush1.bf16.msra.mxu0 %v1000
        %1022 = vmatprep.subr.bf16.mxu0 0
        %1023 = vmatpush1.bf16.msra.mxu0 %v1001
        %1024 = vmatprep.subr.bf16.mxu0 0
        %1025 = vmatpush1.bf16.msra.mxu0 %v1002
        %1026 = vmatprep.subr.bf16.mxu0 0
        %1027 = vmatpush1.bf16.msra.mxu0 %v1003
        %1028 = vmatprep.subr.bf16.mxu0 0
        %1029 = vmatpush1.bf16.msra.mxu0 0
        %1030 = vmatprep.subr.bf16.mxu0 0
        %1031 = vmatpush1.bf16.msra.mxu0 0
        %1032 = vmatprep.subr.bf16.mxu0 0
        %1033 = vmatpush1.bf16.msra.mxu0 0
        %1034 = vmatprep.subr.bf16.mxu0 0
        %1035 = vmatpush1.bf16.msra.mxu0 0
        %1036 = vmatprep.subr.bf16.mxu0 0
        %1037 = vmatpush1.bf16.msra.mxu0 0
        %1038 = vmatprep.subr.bf16.mxu0 0
        %1039 = vmatpush1.bf16.msra.mxu0 0
        %1040 = vmatprep.subr.bf16.mxu0 0
        %1041 = vmatpush1.bf16.msra.mxu0 0
        %1042 = vmatprep.subr.bf16.mxu0 0
        %1043 = vmatpush1.bf16.msra.mxu0 0
        %1044 = vmatprep.mubr.bf16.mxu0 0
        %1045 = vmatmul.mubr.bf16.gmra.mrb[0].mxu0 %v940
        %v1046 = vpop.f32.mrb[0].mxu0
        %v1047 = vadd.f32 %v962, %v1046
        %v1048 = vpop.f32.mrb[0].mxu0
        %v1049 = vpop.f32.mrb[0].mxu0
        %v1050 = vadd.f32 %v962, %v1049
        %v1051 = vpop.f32.mrb[0].mxu0
        %1052 = vdwg.mxu0
        %1053 = vst [vmem:[%s461] sm:$0xff] %v1047
        %1054 = vst [vmem:[%s461 + $0x8] sm:$0xff] %v1050
        %s1055 = sand.u32 %s335, 1
        %s1056 = scalar_lea.sflag [#allocation3], %s1055
        %s1057 = sand.u32 %s335, 1
        %s1058 = smul.addr %s1057, 16
        %s1059 = scalar_lea.vmem [#allocation2], %s1058
        // Predicated region
        $region77: #{conformer_conv_module.1} parent=75 // pred_check
          %p1060 = pneg %p345
        $region78: #{conformer_conv_module.1} parent=75 // pred_check_branch
          %1062 = sbr.rel (%p1060) target = $region80
        $region79: #{conformer_conv_module.1} parent=75 // pred_region
          %s1063 = smul.u32 2, %s28
          %s1065 = ssub.s32 256, 256
          %1066 = vsyncadd %s1056, %s1065
          %s1067 = smul.addr %s1063, 128
          %s1068 = scalar_lea.hbm %s14, %s1067
          %s1069 = sshll.u32 %s1059, 4
          %s1070 = int_to_ptr.vmem [resolvable:$true] %s1069
          %1075 = dma.vmem_to_hbm [thread:$0]  %s1070, 256, %s1068, %s1056, 128, 128, 8
        $region80: #{conformer_conv_module.1} parent=75 // pred_fallthru
          _
      $region76: #{conformer_conv_module.1} parent=5 // pred_fallthru
        _
      %p1076 = scmp.le.s32.totalorder 2, %s23
      // Predicated region
      $region81: #{conformer_conv_module.1} parent=5 // pred_check
        %p1077 = pneg %p1076
      $region82: #{conformer_conv_module.1} parent=5 // pred_check_branch
        %1079 = sbr.rel (%p1077) target = $region84
      $region83: #{conformer_conv_module.1} parent=5 // pred_region
        %s1080 = ssub.s32 %s23, 2
        // Predicated region
        $region85: #{conformer_conv_module.1} parent=83 // pred_check
          %p1081 = pneg %p351
        $region86: #{conformer_conv_module.1} parent=83 // pred_check_branch
          %1083 = sbr.rel (%p1081) target = $region88
        $region87: #{conformer_conv_module.1} parent=83 // pred_region
          %s1084 = sand.u32 %s336, 1
          %s1085 = scalar_lea.sflag [#allocation3], %s1084
          %s1086 = sand.u32 %s336, 1
          %s1087 = smul.addr %s1086, 16
          %s1088 = scalar_lea.vmem [#allocation2], %s1087
          %1089 = dma.done %s1085, 256
        $region88: #{conformer_conv_module.1} parent=83 // pred_fallthru
          _
      $region84: #{conformer_conv_module.1} parent=5 // pred_fallthru
        _
    $region6: #{conformer_conv_module.1} parent=1 // loop_footer
      %s27 = sadd.s32 1, %s23
    $region7: #{conformer_conv_module.1} parent=1 // loop_footer_branch
      %22 = sbr.rel target = $region3
    $region8: #{conformer_conv_module.1} parent=1 // loop_exit
      _
    %1090 = vsyncpa [#allocation3], 1
    %s1091 = scalar_lea.sflag [#allocation3], 1
    %1092 = vsyncpa %s1091, 1

</llo_original>
